<compile_context>
chip_gen: v6e
topology: v6e:2x2x1
jax: 0.10.0
libtpu: 0.0.40
codegen_flags: <defaults>
</compile_context>

<pallas_src>
import jax
import jax.numpy as jnp
from jax.experimental import pallas as pl
from jax.experimental.pallas import tpu as pltpu

_MIN_GAMMA, _MAX_GAMMA = 0.8, 1.2
_MIN_BRGHT, _MAX_BRGHT = 0.5, 2.0
_MIN_SHIFT, _MAX_SHIFT = 0.8, 1.2

_MAX_TILE_HW = 32768  # lanes per block (multiple of 128); ~384 KiB per f32 block at C=3


# ----------------------------------------------------------------------------- kernel
def _make_photometric_kernel(n_frames):
    def kernel(*refs):
        # refs = (x_0, ..., x_{n-1}, gamma_smem, mult, o_0, ..., o_{n-1})
        gamma_ref = refs[n_frames]          # SMEM, shape (B,), float32
        mult_ref = refs[n_frames + 1]       # VMEM block (1, C, 1), float32
        out_refs = refs[n_frames + 2:]

        g = gamma_ref[pl.program_id(0)]                 # per-batch scalar gamma
        m = mult_ref[...]                               # (1, C, 1) brightness*shift

        for f in range(n_frames):
            x = refs[f][...].astype(jnp.float32)        # (1, C, TILE_HW), f32 compute
            y = jnp.power(x, g) * m                     # x**gamma * brightness * shift
            out_refs[f][...] = jnp.clip(y, 0.0, 1.0).astype(out_refs[f].dtype)

    return kernel


# ----------------------------------------------------------------------------- params
def _sample_params(key, b):
    """Per-batch gamma and per-(batch,channel) brightness*shift multiplier (f32)."""
    kg, kb, ks = jax.random.split(key, 3)
    gamma = jax.random.uniform(kg, (b,), dtype=jnp.float32) * (_MAX_GAMMA - _MIN_GAMMA) + _MIN_GAMMA
    brght = jax.random.uniform(kb, (b,), dtype=jnp.float32) * (_MAX_BRGHT - _MIN_BRGHT) + _MIN_BRGHT
    shift = jax.random.uniform(ks, (b, 3), dtype=jnp.float32) * (_MAX_SHIFT - _MIN_SHIFT) + _MIN_SHIFT
    # torch tiles the 3-channel shift once per concatenated frame, so every frame
    # sees the same (B, 3) shift; fuse brightness into it.
    mult = brght[:, None] * shift                      # (B, 3)
    return gamma, mult


# ----------------------------------------------------------------------------- wrapper
def photometric_augmentation(args, key):
    """JAX/Pallas equivalent of PhotometricAugmentation.forward (list of NCHW frames)."""
    n_frames = len(args)
    b, c, h, w = args[0].shape
    assert c == 3, "PhotometricAugmentation defines the colour shift for 3 channels"
    dtype = args[0].dtype

    gamma, mult = _sample_params(key, b)
    mult = mult[:, :, None]                            # (B, C, 1)

    hw = h * w
    hw_pad = ((hw + 127) // 128) * 128                 # keep stores lane-dense
    tile_hw = min(_MAX_TILE_HW, hw_pad)
    grid = (b, pl.cdiv(hw_pad, tile_hw))

    flats = []
    for x in args:
        xf = x.reshape(b, c, hw)
        if hw_pad != hw:
            xf = jnp.pad(xf, ((0, 0), (0, 0), (0, hw_pad - hw)))
        flats.append(xf)

    frame_spec = pl.BlockSpec((1, c, tile_hw), lambda i, t: (i, 0, t))
    in_specs = [frame_spec] * n_frames + [
        pl.BlockSpec(memory_space=pltpu.MemorySpace.SMEM),   # gamma (B,) as SMEM scalars
        pl.BlockSpec((1, c, 1), lambda i, t: (i, 0, 0)),     # mult (B, C, 1); re-DMA only on batch change
    ]
    out_specs = tuple(frame_spec for _ in range(n_frames))
    out_shape = tuple(jax.ShapeDtypeStruct((b, c, hw_pad), dtype) for _ in range(n_frames))

    outs = pl.pallas_call(
        _make_photometric_kernel(n_frames),
        out_shape=out_shape,
        grid=grid,
        in_specs=in_specs,
        out_specs=out_specs,
        compiler_params=pltpu.CompilerParams(
            dimension_semantics=("parallel", "parallel")),
    )(*flats, gamma, mult)

    results = []
    for o in outs:
        if hw_pad != hw:
            o = o[:, :, :hw]
        results.append(o.reshape(b, c, h, w))
    return tuple(results)


def _reference(args, key):
    """Pure-JAX reference with identical parameter generation."""
    b = args[0].shape[0]
    gamma, mult = _sample_params(key, b)
    g = gamma[:, None, None, None]
    m = mult[:, :, None, None]
    outs = []
    for x in args:
        y = jnp.clip(jnp.power(x.astype(jnp.float32), g) * m, 0.0, 1.0).astype(x.dtype)
        outs.append(y)
    return tuple(outs)


# -------------------------------------------------- full module forward (bookkeeping)
def _intrinsic_scale(intrinsic, sx, sy):
    k = intrinsic
    k = k.at[:, 0, 0].multiply(sx)
    k = k.at[:, 0, 2].multiply(sx)
    k = k.at[:, 1, 1].multiply(sy)
    k = k.at[:, 1, 2].multiply(sy)
    return k


def augmentation_resize_only_multiframe(example_dict, key, *, imgsize=(256, 832),
                                         photometric=False):
    """JAX equivalent of Augmentation_Resize_Only_MultiFrame.forward.

    The bandwidth-heavy photometric jitter runs in the Pallas kernel above; the
    resize and the tiny intrinsic / aug_size bookkeeping stay in plain JAX.
    """
    out = dict(example_dict)
    is_right = 'input_right' in example_dict
    im_left = example_dict['input_left']                # (B, S, C, H, W)
    b, s, c, hh, ww = im_left.shape
    new_h, new_w = imgsize
    sy = new_h / hh
    sx = new_w / ww

    def _resize(im):
        # TODO(synk): bilinear interpolate2d stays in jax.image.resize (gather-heavy,
        # no clean Pallas tiling); only the photometric pass is a Pallas kernel.
        im_m = im.reshape(b * s, c, hh, ww)
        im_m = jax.image.resize(im_m, (b * s, c, new_h, new_w),
                                method='bilinear', antialias=False)
        return im_m.reshape(b, s, c, new_h, new_w).astype(im.dtype)

    im_left = _resize(im_left)
    k_l = _intrinsic_scale(example_dict['input_k_l'], sx, sy)
    if is_right:
        im_right = _resize(example_dict['input_right'])
        k_r = _intrinsic_scale(example_dict['input_k_r'], sx, sy)

    if photometric:
        # TODO(synk): the reference gates this on torch.rand(1) > 0.5; that host-side
        # coin flip is left to the caller — when `photometric=True` it is always applied.
        k_left, k_right = jax.random.split(key)

        def _photo(im, kk):
            merged = jnp.transpose(im, (0, 2, 3, 4, 1)).reshape(b, c, new_h, new_w * s)
            merged = photometric_augmentation([merged], kk)[0]
            return jnp.transpose(merged.reshape(b, c, new_h, new_w, s), (0, 4, 1, 2, 3))

        im_left = _photo(im_left, k_left)
        if is_right:
            im_right = _photo(im_right, k_right)

    out['input_left_aug'] = im_left
    out['input_k_l_aug'] = k_l
    k_l_flip = k_l.at[:, 0, 2].set(im_left.shape[4] - k_l[:, 0, 2])
    out['input_k_l_flip_aug'] = k_l_flip
    if is_right:
        out['input_right_aug'] = im_right
        out['input_k_r_aug'] = k_r
        k_r_flip = k_r.at[:, 0, 2].set(im_right.shape[4] - k_r[:, 0, 2])
        out['input_k_r_flip_aug'] = k_r_flip

    aug_size = jnp.zeros_like(example_dict['input_size'])
    aug_size = aug_size.at[:, 0].set(new_h).at[:, 1].set(new_w)
    out['aug_size'] = aug_size
    return out


# ----------------------------------------------------------------------------- demo
if __name__ == "__main__":
    key = jax.random.PRNGKey(0)
    k_img0, k_img1, k_aug, k_dict = jax.random.split(key, 4)

    # 1) Direct numerical check of the Pallas photometric kernel (two frames).
    img0 = jax.random.uniform(k_img0, (2, 3, 16, 16), dtype=jnp.float32)
    img1 = jax.random.uniform(k_img1, (2, 3, 16, 16), dtype=jnp.float32)
    outs = jax.block_until_ready(photometric_augmentation([img0, img1], k_aug))
    refs = _reference([img0, img1], k_aug)
    for o, r in zip(outs, refs):
        assert o.shape == r.shape and o.dtype == r.dtype
        assert jnp.allclose(o, r, atol=1e-5, rtol=1e-5), "photometric mismatch vs reference"

    # 2) Full Augmentation_Resize_Only_MultiFrame forward at small shapes.
    b, s, c, hh, ww = 2, 2, 3, 16, 24
    kil, kir = jax.random.split(k_dict)
    example = {
        'input_left': jax.random.uniform(kil, (b, s, c, hh, ww), dtype=jnp.float32),
        'input_right': jax.random.uniform(kir, (b, s, c, hh, ww), dtype=jnp.float32),
        'input_k_l': jnp.tile(jnp.eye(3, dtype=jnp.float32)[None], (b, 1, 1)) * 100.0,
        'input_k_r': jnp.tile(jnp.eye(3, dtype=jnp.float32)[None], (b, 1, 1)) * 100.0,
        'input_size': jnp.tile(jnp.array([[hh, ww]], dtype=jnp.float32), (b, 1)),
    }
    aug = augmentation_resize_only_multiframe(example, k_aug, imgsize=(32, 64),
                                              photometric=True)
    left_aug = jax.block_until_ready(aug['input_left_aug'])
    assert left_aug.shape == (b, s, c, 32, 64)
    assert aug['input_right_aug'].shape == (b, s, c, 32, 64)
    assert aug['aug_size'].shape == example['input_size'].shape

    print("KERNEL_OK")
</pallas_src>

<mosaic_0001>
module attributes {stable_mosaic.version = 11 : i64} {
  func.func @kernel(%arg0: i32, %arg1: i32, %arg2: memref<1x3x256xf32, #tpu.memory_space<vmem>>, %arg3: memref<1x3x256xf32, #tpu.memory_space<vmem>>, %arg4: memref<2xf32, #tpu.memory_space<smem>>, %arg5: memref<1x3x1xf32, #tpu.memory_space<vmem>>, %arg6: memref<1x3x256xf32, #tpu.memory_space<vmem>>, %arg7: memref<1x3x256xf32, #tpu.memory_space<vmem>>) attributes {dimension_semantics = [#tpu.dimension_semantics<parallel>, #tpu.dimension_semantics<parallel>], iteration_bounds = array<i64: 2, 1>, scalar_prefetch = 0 : i64, scratch_operands = 0 : i64, tpu.core_type = #tpu.core_type<tc>, window_params = [{transform_indices = @transform_0, window_bounds = array<i64: 1, 3, 256>}, {transform_indices = @transform_1, window_bounds = array<i64: 1, 3, 256>}, {transform_indices = @transform_2, window_bounds = array<i64: 2>}, {transform_indices = @transform_3, window_bounds = array<i64: 1, 3, 1>}, {transform_indices = @transform_4, window_bounds = array<i64: 1, 3, 256>}, {transform_indices = @transform_5, window_bounds = array<i64: 1, 3, 256>}]} {
    %0 = arith.index_cast %arg0 : i32 to index
    %1 = memref.load %arg4[%0] : memref<2xf32, #tpu.memory_space<smem>>
    %c0 = arith.constant 0 : index
    %c0_0 = arith.constant 0 : index
    %c0_1 = arith.constant 0 : index
    %2 = vector.load %arg5[%c0, %c0_0, %c0_1] : memref<1x3x1xf32, #tpu.memory_space<vmem>>, vector<1x3x1xf32>
    %c0_2 = arith.constant 0 : index
    %c0_3 = arith.constant 0 : index
    %c0_4 = arith.constant 0 : index
    %3 = vector.load %arg2[%c0_2, %c0_3, %c0_4] : memref<1x3x256xf32, #tpu.memory_space<vmem>>, vector<1x3x256xf32>
    %4 = vector.broadcast %1 : f32 to vector<1x3x256xf32>
    %5 = math.powf %3, %4 : vector<1x3x256xf32>
    %6 = vector.broadcast %2 : vector<1x3x1xf32> to vector<1x3x256xf32>
    %7 = arith.mulf %5, %6 : vector<1x3x256xf32>
    %cst = arith.constant 0.000000e+00 : f32
    %cst_5 = arith.constant 1.000000e+00 : f32
    %8 = vector.broadcast %cst : f32 to vector<1x3x256xf32>
    %9 = arith.maximumf %8, %7 : vector<1x3x256xf32>
    %10 = vector.broadcast %cst_5 : f32 to vector<1x3x256xf32>
    %11 = arith.minimumf %10, %9 : vector<1x3x256xf32>
    %c0_6 = arith.constant 0 : index
    %c0_7 = arith.constant 0 : index
    %c0_8 = arith.constant 0 : index
    %12 = vector.load %arg6[%c0_6, %c0_7, %c0_8] : memref<1x3x256xf32, #tpu.memory_space<vmem>>, vector<1x3x256xf32>
    tpu.vector_store %arg6[%c0_6, %c0_7, %c0_8], %11 {strides = array<i32>} : memref<1x3x256xf32, #tpu.memory_space<vmem>>, vector<1x3x256xf32>,
    %c0_9 = arith.constant 0 : index
    %c0_10 = arith.constant 0 : index
    %c0_11 = arith.constant 0 : index
    %13 = vector.load %arg3[%c0_9, %c0_10, %c0_11] : memref<1x3x256xf32, #tpu.memory_space<vmem>>, vector<1x3x256xf32>
    %14 = vector.broadcast %1 : f32 to vector<1x3x256xf32>
    %15 = math.powf %13, %14 : vector<1x3x256xf32>
    %16 = vector.broadcast %2 : vector<1x3x1xf32> to vector<1x3x256xf32>
    %17 = arith.mulf %15, %16 : vector<1x3x256xf32>
    %cst_12 = arith.constant 0.000000e+00 : f32
    %cst_13 = arith.constant 1.000000e+00 : f32
    %18 = vector.broadcast %cst_12 : f32 to vector<1x3x256xf32>
    %19 = arith.maximumf %18, %17 : vector<1x3x256xf32>
    %20 = vector.broadcast %cst_13 : f32 to vector<1x3x256xf32>
    %21 = arith.minimumf %20, %19 : vector<1x3x256xf32>
    %c0_14 = arith.constant 0 : index
    %c0_15 = arith.constant 0 : index
    %c0_16 = arith.constant 0 : index
    %22 = vector.load %arg7[%c0_14, %c0_15, %c0_16] : memref<1x3x256xf32, #tpu.memory_space<vmem>>, vector<1x3x256xf32>
    tpu.vector_store %arg7[%c0_14, %c0_15, %c0_16], %21 {strides = array<i32>} : memref<1x3x256xf32, #tpu.memory_space<vmem>>, vector<1x3x256xf32>,
    return
  }
  func.func @transform_0(%arg0: i32, %arg1: i32) -> (i32, i32, i32) {
    %c0_i32 = arith.constant 0 : i32
    %c0_i32_0 = arith.constant 0 : i32
    return %arg0, %c0_i32, %arg1 : i32, i32, i32
  }
  func.func @transform_1(%arg0: i32, %arg1: i32) -> (i32, i32, i32) {
    %c0_i32 = arith.constant 0 : i32
    %c0_i32_0 = arith.constant 0 : i32
    return %arg0, %c0_i32, %arg1 : i32, i32, i32
  }
  func.func @transform_2(%arg0: i32, %arg1: i32) -> i32 {
    %c0_i32 = arith.constant 0 : i32
    %c0_i32_0 = arith.constant 0 : i32
    return %c0_i32 : i32
  }
  func.func @transform_3(%arg0: i32, %arg1: i32) -> (i32, i32, i32) {
    %c0_i32 = arith.constant 0 : i32
    %c0_i32_0 = arith.constant 0 : i32
    %c0_i32_1 = arith.constant 0 : i32
    return %arg0, %c0_i32, %c0_i32_0 : i32, i32, i32
  }
  func.func @transform_4(%arg0: i32, %arg1: i32) -> (i32, i32, i32) {
    %c0_i32 = arith.constant 0 : i32
    %c0_i32_0 = arith.constant 0 : i32
    return %arg0, %c0_i32, %arg1 : i32, i32, i32
  }
  func.func @transform_5(%arg0: i32, %arg1: i32) -> (i32, i32, i32) {
    %c0_i32 = arith.constant 0 : i32
    %c0_i32_0 = arith.constant 0 : i32
    return %arg0, %c0_i32, %arg1 : i32, i32, i32
  }
}

</mosaic_0001>

<llo_original>
// kernel: tpu_custom_call.1
$region0: #{tpu_custom_call.1}
  #allocation0 [shape = 'u32[]', space=smem, size = 0x4, offset = 0x4, fixed_abs, tag = 'smem constant byte address 0x4 - core index']
  #allocation1 [shape = 'u32[144,128]{1,0:T(1,128)}', space=vmem, size = 0x12000, scoped, tag = 'internal scratch']
  %s0 = inlined_call_operand.vmem [shape: f32[2,3,256], index: 0, kind: input, shape index: {}]
  %s1 = inlined_call_operand.vmem [shape: f32[2,3,256], index: 1, kind: input, shape index: {}]
  %s2 = inlined_call_operand.vmem [shape: f32[2], index: 2, kind: input, shape index: {}]
  %s3 = inlined_call_operand.vmem [shape: f32[2,3,1], index: 3, kind: input, shape index: {}]
  %s4 = inlined_call_operand.vmem [shape: f32[2,3,256], index: 4, kind: output, shape index: {0}]
  %s5 = inlined_call_operand.vmem [shape: f32[2,3,256], index: 5, kind: output, shape index: {1}]
  %6 = xla_tuple %s4, %s5
  %s7 = sld [smem:[#allocation0]]
  $region61: #{tpu_custom_call.1} parent=0
    _
  %s9 = ssub.s32 1, %s7
  %s10 = scalar_select 0, %s9, %s7
  $region1: #{tpu_custom_call.1} parent=0
    #allocation2 [shape = 'u8[512]{0}', space=smem, size = 0x200, scoped, tag = 'input window, operand 2, single buffered']
    #allocation3 [shape = 's32[2]{0}', space=sflag, size = 0x8, scoped, tag = 'scoped memory for tpu_custom_call.1']
    %11 = vsyncpa [#allocation3], 0
    loop: start=0, step=1, limit=4
    $region2: #{tpu_custom_call.1} parent=1 // loop_pre_header
      _
    $region3: #{tpu_custom_call.1} parent=1 // loop_header
      %s13 = sphi 0, %s17
      %p14 = scmp.ge.s32.totalorder %s13, 4
      %s20 = sphi 0, %s32
      %s21 = sphi 0, %s28
      %s22 = sphi 0, %s20
      %s23 = sphi 0, %s21
      %s24 = sphi 0, %s22
      %s25 = sphi 0, %s23
      %s37 = sphi 0, %s39
      %s40 = sphi 0, %s37
      %s41 = sphi 0, %s40
      %s57 = sphi 0, %s41
      %s65 = sphi 0, %s67
      %s68 = sphi 0, %s65
      %s69 = sphi 0, %s68
      %s85 = sphi 0, %s69
      %s89 = sphi 0, %s89
      %s91 = sphi 0, %s89
      %s92 = sphi 0, %s91
      %s106 = sphi 0, %s92
      %s112 = sphi 0, %s114
      %s115 = sphi 0, %s112
      %s116 = sphi 0, %s115
      %s132 = sphi 0, %s116
      %s140 = sphi 0, %s142
      %s143 = sphi 0, %s140
      %s144 = sphi 0, %s143
      %s160 = sphi 0, %s144
      %s168 = sphi 0, %s170
      %s171 = sphi 0, %s168
      %s172 = sphi 0, %s171
      %s188 = sphi 0, %s172
    $region4: #{tpu_custom_call.1} parent=1 // loop_header_branch
      %16 = sbr.rel (%p14) target = $region8
    $region5: #{tpu_custom_call.1} parent=1 // loop_body
      %s18 = ssub.s32 %s13, 1
      %s19 = ssub.s32 %s13, 2
      %s26 = sadd.s32 1, %s21
      %p27 = scmp.ge.s32.totalorder %s26, 1
      %s28 = scalar_select %p27, 0, %s26
      %s29 = sadd.s32 1, %s20
      %s30 = scalar_select %p27, %s29, %s20
      %p31 = scmp.ge.s32.totalorder %s30, 2
      %s32 = scalar_select %p31, 0, %s30
      %s33 = ssub.s32 %s20, %s32
      %s34 = ssub.s32 %s21, %s28
      %s35 = sor.u32 %s33, %s34
      %p36 = scmp.eq.s32.totalorder %s35, 0
      %s38 = sadd.s32 %s37, 1
      %s39 = scalar_select %p36, %s37, %s38
      %p42 = pneg %p36
      %p43 = scmp.eq.s32.totalorder %s13, 1
      %p44 = por %p42, %p43
      %p45 = scmp.ne.s32.totalorder %s37, %s40
      %p46 = scmp.eq.s32.totalorder %s13, 0
      %p47 = por %p45, %p46
      %p48 = scmp.ne.s32.totalorder %s37, %s40
      %p49 = scmp.eq.s32.totalorder %s18, 1
      %p50 = por %p48, %p49
      %p51 = scmp.ne.s32.totalorder %s40, %s41
      %p52 = scmp.eq.s32.totalorder %s18, 0
      %p53 = por %p51, %p52
      %p54 = scmp.ne.s32.totalorder %s40, %s41
      %p55 = scmp.eq.s32.totalorder %s19, 1
      %p56 = por %p54, %p55
      %p58 = scmp.ne.s32.totalorder %s41, %s57
      %p59 = scmp.eq.s32.totalorder %s19, 0
      %p60 = por %p58, %p59
      %s61 = ssub.s32 %s20, %s32
      %s62 = ssub.s32 %s21, %s28
      %s63 = sor.u32 %s61, %s62
      %p64 = scmp.eq.s32.totalorder %s63, 0
      %s66 = sadd.s32 %s65, 1
      %s67 = scalar_select %p64, %s65, %s66
      %p70 = pneg %p64
      %p71 = scmp.eq.s32.totalorder %s13, 1
      %p72 = por %p70, %p71
      %p73 = scmp.ne.s32.totalorder %s65, %s68
      %p74 = scmp.eq.s32.totalorder %s13, 0
      %p75 = por %p73, %p74
      %p76 = scmp.ne.s32.totalorder %s65, %s68
      %p77 = scmp.eq.s32.totalorder %s18, 1
      %p78 = por %p76, %p77
      %p79 = scmp.ne.s32.totalorder %s68, %s69
      %p80 = scmp.eq.s32.totalorder %s18, 0
      %p81 = por %p79, %p80
      %p82 = scmp.ne.s32.totalorder %s68, %s69
      %p83 = scmp.eq.s32.totalorder %s19, 1
      %p84 = por %p82, %p83
      %p86 = scmp.ne.s32.totalorder %s69, %s85
      %p87 = scmp.eq.s32.totalorder %s19, 0
      %p88 = por %p86, %p87
      %s90 = sadd.s32 %s89, 1
      %p93 = scmp.eq.s32.totalorder %s13, 1
      %p94 = scmp.ne.s32.totalorder %s89, %s91
      %p95 = scmp.eq.s32.totalorder %s13, 0
      %p96 = por %p94, %p95
      %p97 = scmp.ne.s32.totalorder %s89, %s91
      %p98 = scmp.eq.s32.totalorder %s18, 1
      %p99 = por %p97, %p98
      %p100 = scmp.ne.s32.totalorder %s91, %s92
      %p101 = scmp.eq.s32.totalorder %s18, 0
      %p102 = por %p100, %p101
      %p103 = scmp.ne.s32.totalorder %s91, %s92
      %p104 = scmp.eq.s32.totalorder %s19, 1
      %p105 = por %p103, %p104
      %p107 = scmp.ne.s32.totalorder %s92, %s106
      %p108 = scmp.eq.s32.totalorder %s19, 0
      %p109 = por %p107, %p108
      %s110 = ssub.s32 %s20, %s32
      %p111 = scmp.eq.s32.totalorder %s110, 0
      %s113 = sadd.s32 %s112, 1
      %s114 = scalar_select %p111, %s112, %s113
      %p117 = pneg %p111
      %p118 = scmp.eq.s32.totalorder %s13, 1
      %p119 = por %p117, %p118
      %p120 = scmp.ne.s32.totalorder %s112, %s115
      %p121 = scmp.eq.s32.totalorder %s13, 0
      %p122 = por %p120, %p121
      %p123 = scmp.ne.s32.totalorder %s112, %s115
      %p124 = scmp.eq.s32.totalorder %s18, 1
      %p125 = por %p123, %p124
      %p126 = scmp.ne.s32.totalorder %s115, %s116
      %p127 = scmp.eq.s32.totalorder %s18, 0
      %p128 = por %p126, %p127
      %p129 = scmp.ne.s32.totalorder %s115, %s116
      %p130 = scmp.eq.s32.totalorder %s19, 1
      %p131 = por %p129, %p130
      %p133 = scmp.ne.s32.totalorder %s116, %s132
      %p134 = scmp.eq.s32.totalorder %s19, 0
      %p135 = por %p133, %p134
      %s136 = ssub.s32 %s20, %s32
      %s137 = ssub.s32 %s21, %s28
      %s138 = sor.u32 %s136, %s137
      %p139 = scmp.eq.s32.totalorder %s138, 0
      %s141 = sadd.s32 %s140, 1
      %s142 = scalar_select %p139, %s140, %s141
      %p145 = pneg %p139
      %p146 = scmp.eq.s32.totalorder %s13, 1
      %p147 = por %p145, %p146
      %p148 = scmp.ne.s32.totalorder %s140, %s143
      %p149 = scmp.eq.s32.totalorder %s13, 0
      %p150 = por %p148, %p149
      %p151 = scmp.ne.s32.totalorder %s140, %s143
      %p152 = scmp.eq.s32.totalorder %s18, 1
      %p153 = por %p151, %p152
      %p154 = scmp.ne.s32.totalorder %s143, %s144
      %p155 = scmp.eq.s32.totalorder %s18, 0
      %p156 = por %p154, %p155
      %p157 = scmp.ne.s32.totalorder %s143, %s144
      %p158 = scmp.eq.s32.totalorder %s19, 1
      %p159 = por %p157, %p158
      %p161 = scmp.ne.s32.totalorder %s144, %s160
      %p162 = scmp.eq.s32.totalorder %s19, 0
      %p163 = por %p161, %p162
      %s164 = ssub.s32 %s20, %s32
      %s165 = ssub.s32 %s21, %s28
      %s166 = sor.u32 %s164, %s165
      %p167 = scmp.eq.s32.totalorder %s166, 0
      %s169 = sadd.s32 %s168, 1
      %s170 = scalar_select %p167, %s168, %s169
      %p173 = pneg %p167
      %p174 = scmp.eq.s32.totalorder %s13, 1
      %p175 = por %p173, %p174
      %p176 = scmp.ne.s32.totalorder %s168, %s171
      %p177 = scmp.eq.s32.totalorder %s13, 0
      %p178 = por %p176, %p177
      %p179 = scmp.ne.s32.totalorder %s168, %s171
      %p180 = scmp.eq.s32.totalorder %s18, 1
      %p181 = por %p179, %p180
      %p182 = scmp.ne.s32.totalorder %s171, %s172
      %p183 = scmp.eq.s32.totalorder %s18, 0
      %p184 = por %p182, %p183
      %p185 = scmp.ne.s32.totalorder %s171, %s172
      %p186 = scmp.eq.s32.totalorder %s19, 1
      %p187 = por %p185, %p186
      %p189 = scmp.ne.s32.totalorder %s172, %s188
      %p190 = scmp.eq.s32.totalorder %s19, 0
      %p191 = por %p189, %p190
      %p192 = scmp.le.s32.totalorder 1, %s13
      %p193 = scmp.lt.s32.totalorder %s13, 3
      %p194 = pnand %p192, %p193
      %p195 = pneg %p194
      // Predicated region
      $region9: #{tpu_custom_call.1} parent=5 // pred_check
        _
      $region10: #{tpu_custom_call.1} parent=5 // pred_check_branch
        %197 = sbr.rel (%p194) target = $region12
      $region11: #{tpu_custom_call.1} parent=5 // pred_region
        %s198 = ssub.s32 %s13, 1
        // Predicated region
        $region13: #{tpu_custom_call.1} parent=11 // pred_check
          %p199 = pneg %p102
        $region14: #{tpu_custom_call.1} parent=11 // pred_check_branch
          %201 = sbr.rel (%p199) target = $region16
        $region15: #{tpu_custom_call.1} parent=11 // pred_region
          %s203 = ssub.s32 16, 16
          %204 = vsyncadd [#allocation3], %s203
          %s206 = sshll.u32 %s2, 4
          %s207 = int_to_ptr.vmem [resolvable:$true] %s206
          %209 = dma.vmem_to_smem %s207, 16, [#allocation2], [#allocation3]
        $region16: #{tpu_custom_call.1} parent=11 // pred_fallthru
          _
      $region12: #{tpu_custom_call.1} parent=5 // pred_fallthru
        _
      %p210 = scmp.lt.s32.totalorder %s13, 2
      // Predicated region
      $region17: #{tpu_custom_call.1} parent=5 // pred_check
        %p211 = pneg %p210
      $region18: #{tpu_custom_call.1} parent=5 // pred_check_branch
        %213 = sbr.rel (%p211) target = $region20
      $region19: #{tpu_custom_call.1} parent=5 // pred_region
        // Predicated region
        $region21: #{tpu_custom_call.1} parent=19 // pred_check
          %p214 = pneg %p47
        $region22: #{tpu_custom_call.1} parent=19 // pred_check_branch
          %216 = sbr.rel (%p214) target = $region24
        $region23: #{tpu_custom_call.1} parent=19 // pred_region
          %s217 = smul.u32 2, %s21
          %p218 = scmp.lt.s32.totalorder %s20, 1
          %s219 = scalar_select %p218, %s20, 1
          %p220 = scmp.lt.s32.totalorder %s217, 1
          %s221 = scalar_select %p220, %s217, 1
          %s222 = smul.addr %s219, 2
          %s223 = sadd.s32 %s221, %s222
          %s224 = smul.addr %s223, 4
          %s225 = scalar_lea.vmem %s0, %s224
          %s226 = smul.u32 2, %s21
        $region24: #{tpu_custom_call.1} parent=19 // pred_fallthru
          _
        // Predicated region
        $region25: #{tpu_custom_call.1} parent=19 // pred_check
          %p227 = pneg %p75
        $region26: #{tpu_custom_call.1} parent=19 // pred_check_branch
          %229 = sbr.rel (%p227) target = $region28
        $region27: #{tpu_custom_call.1} parent=19 // pred_region
          %s230 = smul.u32 2, %s21
          %p231 = scmp.lt.s32.totalorder %s20, 1
          %s232 = scalar_select %p231, %s20, 1
          %p233 = scmp.lt.s32.totalorder %s230, 1
          %s234 = scalar_select %p233, %s230, 1
          %s235 = smul.addr %s232, 2
          %s236 = sadd.s32 %s234, %s235
          %s237 = smul.addr %s236, 4
          %s238 = scalar_lea.vmem %s1, %s237
          %s239 = smul.u32 2, %s21
        $region28: #{tpu_custom_call.1} parent=19 // pred_fallthru
          _
        // Predicated region
        $region29: #{tpu_custom_call.1} parent=19 // pred_check
          %p240 = pneg %p122
        $region30: #{tpu_custom_call.1} parent=19 // pred_check_branch
          %242 = sbr.rel (%p240) target = $region32
        $region31: #{tpu_custom_call.1} parent=19 // pred_region
          %p243 = scmp.lt.s32.totalorder %s20, 1
          %s244 = scalar_select %p243, %s20, 1
          %s245 = smul.addr %s244, 4
          %s246 = scalar_lea.vmem %s3, %s245
        $region32: #{tpu_custom_call.1} parent=19 // pred_fallthru
          _
      $region20: #{tpu_custom_call.1} parent=5 // pred_fallthru
        _
      %p247 = scmp.le.s32.totalorder 1, %s13
      %p248 = scmp.lt.s32.totalorder %s13, 3
      %p249 = pnand %p247, %p248
      %p250 = pneg %p249
      // Predicated region
      $region33: #{tpu_custom_call.1} parent=5 // pred_check
        _
      $region34: #{tpu_custom_call.1} parent=5 // pred_check_branch
        %252 = sbr.rel (%p249) target = $region36
      $region35: #{tpu_custom_call.1} parent=5 // pred_region
        %s253 = ssub.s32 %s13, 1
        // Predicated region
        $region37: #{tpu_custom_call.1} parent=35 // pred_check
          %p254 = pneg %p102
        $region38: #{tpu_custom_call.1} parent=35 // pred_check_branch
          %256 = sbr.rel (%p254) target = $region40
        $region39: #{tpu_custom_call.1} parent=35 // pred_region
          %257 = dma.done [#allocation3], 16
        $region40: #{tpu_custom_call.1} parent=35 // pred_fallthru
          _
        %258 = sfence
        %s259 = smul.u32 2, %s23
        %p260 = scmp.lt.s32.totalorder %s22, 1
        %s261 = scalar_select %p260, %s22, 1
        %p262 = scmp.lt.s32.totalorder %s259, 1
        %s263 = scalar_select %p262, %s259, 1
        %s264 = smul.addr %s261, 2
        %s265 = sadd.s32 %s263, %s264
        %s266 = smul.addr %s265, 4
        %s267 = scalar_lea.vmem %s0, %s266
        %p268 = pneg %p53
        %p269 = pneg %p50
        %s270 = smul.u32 2, %s23
        %p271 = scmp.lt.s32.totalorder %s22, 1
        %s272 = scalar_select %p271, %s22, 1
        %p273 = scmp.lt.s32.totalorder %s270, 1
        %s274 = scalar_select %p273, %s270, 1
        %s275 = smul.addr %s272, 2
        %s276 = sadd.s32 %s274, %s275
        %s277 = smul.addr %s276, 4
        %s278 = scalar_lea.vmem %s1, %s277
        %p279 = pneg %p81
        %p280 = pneg %p78
        %p281 = pneg %p102
        %p282 = pneg %p99
        %p283 = scmp.lt.s32.totalorder %s22, 1
        %s284 = scalar_select %p283, %s22, 1
        %s285 = smul.addr %s284, 4
        %s286 = scalar_lea.vmem %s3, %s285
        %p287 = pneg %p128
        %p288 = pneg %p125
        %p289 = pneg %p156
        %p290 = pneg %p153
        %s291 = smul.u32 2, %s23
        %p292 = scmp.lt.s32.totalorder %s22, 1
        %s293 = scalar_select %p292, %s22, 1
        %p294 = scmp.lt.s32.totalorder %s291, 1
        %s295 = scalar_select %p294, %s291, 1
        %s296 = smul.addr %s293, 2
        %s297 = sadd.s32 %s295, %s296
        %s298 = smul.addr %s297, 4
        %s299 = scalar_lea.vmem %s4, %s298
        %p300 = pneg %p184
        %p301 = pneg %p181
        %s302 = smul.u32 2, %s23
        %p303 = scmp.lt.s32.totalorder %s22, 1
        %s304 = scalar_select %p303, %s22, 1
        %p305 = scmp.lt.s32.totalorder %s302, 1
        %s306 = scalar_select %p305, %s302, 1
        %s307 = smul.addr %s304, 2
        %s308 = sadd.s32 %s306, %s307
        %s309 = smul.addr %s308, 4
        %s310 = scalar_lea.vmem %s5, %s309
        %s311 = smul.u32 2, %s23
        %p312 = scmp.lt.s32.totalorder %s22, 1
        %s313 = scalar_select %p312, %s22, 1
        %p314 = scmp.lt.s32.totalorder %s311, 1
        %s315 = scalar_select %p314, %s311, 1
        %s316 = smul.addr %s313, 2
        %s317 = sadd.s32 %s315, %s316
        %s318 = smul.addr %s317, 4
        %s319 = scalar_lea.vmem %s0, %s318
        %s320 = smul.u32 2, %s23
        %s321 = smul.u32 2, %s23
        %p322 = scmp.lt.s32.totalorder %s22, 1
        %s323 = scalar_select %p322, %s22, 1
        %p324 = scmp.lt.s32.totalorder %s321, 1
        %s325 = scalar_select %p324, %s321, 1
        %s326 = smul.addr %s323, 2
        %s327 = sadd.s32 %s325, %s326
        %s328 = smul.addr %s327, 4
        %s329 = scalar_lea.vmem %s1, %s328
        %s330 = smul.u32 2, %s23
        %p331 = scmp.lt.s32.totalorder %s22, 1
        %s332 = scalar_select %p331, %s22, 1
        %s333 = smul.addr %s332, 4
        %s334 = scalar_lea.vmem %s3, %s333
        %s335 = smul.u32 2, %s23
        %p336 = scmp.lt.s32.totalorder %s22, 1
        %s337 = scalar_select %p336, %s22, 1
        %p338 = scmp.lt.s32.totalorder %s335, 1
        %s339 = scalar_select %p338, %s335, 1
        %s340 = smul.addr %s337, 2
        %s341 = sadd.s32 %s339, %s340
        %s342 = smul.addr %s341, 4
        %s343 = scalar_lea.vmem %s4, %s342
        %s344 = smul.u32 2, %s23
        %s345 = smul.u32 2, %s23
        %p346 = scmp.lt.s32.totalorder %s22, 1
        %s347 = scalar_select %p346, %s22, 1
        %p348 = scmp.lt.s32.totalorder %s345, 1
        %s349 = scalar_select %p348, %s345, 1
        %s350 = smul.addr %s347, 2
        %s351 = sadd.s32 %s349, %s350
        %s352 = smul.addr %s351, 4
        %s353 = scalar_lea.vmem %s5, %s352
        %s354 = smul.u32 2, %s23
        %s355 = sld [smem:[#allocation2 + %s22]]
        %v356 = vld [vmem:[%s334] sm:$0x7]
        %v357 = vld [vmem:[%s319] sm:$0x77]
        %v358 = vstv %s355
        %v359 = vpow.f32 %v357, %v358
        %361 = vset.pattern.permute.xlu0 0
        %362 = vperm.xlu0 %361, %v356
        %v363 = vpop.permute.xlu0 %362
        %v365 = vunpack.c.l.s4 839922192
        %v366 = vunpack.c.0.s8 %v365
        %v367 = vlaneseq
        %v368 = vshrl.u32 %v367, 7
        %v369 = vsub.s32 %v366, %v368
        %v370 = vrot.slane %v363, %v369
        %v372 = vmul.f32 %v359, %v370
        %v373 = vmax.f32 %v372, 0.0
        %v374 = vmin.f32 %v373, 1.0
        %375 = vst [vmem:[%s343] sm:$0x77] %v374
        %v376 = vld [vmem:[%s329] sm:$0x77]
        %v377 = vpow.f32 %v376, %v358
        %v378 = vmul.f32 %v377, %v370
        %v379 = vmax.f32 %v378, 0.0
        %v380 = vmin.f32 %v379, 1.0
        %381 = vst [vmem:[%s353] sm:$0x77] %v380
        %s382 = smul.u32 2, %s23
        %p383 = scmp.lt.s32.totalorder %s22, 1
        %s384 = scalar_select %p383, %s22, 1
        %p385 = scmp.lt.s32.totalorder %s382, 1
        %s386 = scalar_select %p385, %s382, 1
        %s387 = smul.addr %s384, 2
        %s388 = sadd.s32 %s386, %s387
        %s389 = smul.addr %s388, 4
        %s390 = scalar_lea.vmem %s4, %s389
        %s391 = smul.u32 2, %s23
        %p392 = scmp.lt.s32.totalorder %s22, 1
        %s393 = scalar_select %p392, %s22, 1
        %p394 = scmp.lt.s32.totalorder %s391, 1
        %s395 = scalar_select %p394, %s391, 1
        %s396 = smul.addr %s393, 2
        %s397 = sadd.s32 %s395, %s396
        %s398 = smul.addr %s397, 4
        %s399 = scalar_lea.vmem %s5, %s398
        // Predicated region
        $region41: #{tpu_custom_call.1} parent=35 // pred_check
          %p400 = pneg %p153
        $region42: #{tpu_custom_call.1} parent=35 // pred_check_branch
          %402 = sbr.rel (%p400) target = $region44
        $region43: #{tpu_custom_call.1} parent=35 // pred_region
          %s403 = smul.u32 2, %s23
        $region44: #{tpu_custom_call.1} parent=35 // pred_fallthru
          _
        // Predicated region
        $region45: #{tpu_custom_call.1} parent=35 // pred_check
          %p404 = pneg %p181
        $region46: #{tpu_custom_call.1} parent=35 // pred_check_branch
          %406 = sbr.rel (%p404) target = $region48
        $region47: #{tpu_custom_call.1} parent=35 // pred_region
          %s407 = smul.u32 2, %s23
        $region48: #{tpu_custom_call.1} parent=35 // pred_fallthru
          _
      $region36: #{tpu_custom_call.1} parent=5 // pred_fallthru
        _
      %p408 = scmp.le.s32.totalorder 2, %s13
      // Predicated region
      $region49: #{tpu_custom_call.1} parent=5 // pred_check
        %p409 = pneg %p408
      $region50: #{tpu_custom_call.1} parent=5 // pred_check_branch
        %411 = sbr.rel (%p409) target = $region52
      $region51: #{tpu_custom_call.1} parent=5 // pred_region
        %s412 = ssub.s32 %s13, 2
        // Predicated region
        $region53: #{tpu_custom_call.1} parent=51 // pred_check
          %p413 = pneg %p159
        $region54: #{tpu_custom_call.1} parent=51 // pred_check_branch
          %415 = sbr.rel (%p413) target = $region56
        $region55: #{tpu_custom_call.1} parent=51 // pred_region
          %s416 = smul.u32 2, %s25
          %p417 = scmp.lt.s32.totalorder %s24, 1
          %s418 = scalar_select %p417, %s24, 1
          %p419 = scmp.lt.s32.totalorder %s416, 1
          %s420 = scalar_select %p419, %s416, 1
          %s421 = smul.addr %s418, 2
          %s422 = sadd.s32 %s420, %s421
          %s423 = smul.addr %s422, 4
          %s424 = scalar_lea.vmem %s4, %s423
        $region56: #{tpu_custom_call.1} parent=51 // pred_fallthru
          _
        // Predicated region
        $region57: #{tpu_custom_call.1} parent=51 // pred_check
          %p425 = pneg %p187
        $region58: #{tpu_custom_call.1} parent=51 // pred_check_branch
          %427 = sbr.rel (%p425) target = $region60
        $region59: #{tpu_custom_call.1} parent=51 // pred_region
          %s428 = smul.u32 2, %s25
          %p429 = scmp.lt.s32.totalorder %s24, 1
          %s430 = scalar_select %p429, %s24, 1
          %p431 = scmp.lt.s32.totalorder %s428, 1
          %s432 = scalar_select %p431, %s428, 1
          %s433 = smul.addr %s430, 2
          %s434 = sadd.s32 %s432, %s433
          %s435 = smul.addr %s434, 4
          %s436 = scalar_lea.vmem %s5, %s435
        $region60: #{tpu_custom_call.1} parent=51 // pred_fallthru
          _
      $region52: #{tpu_custom_call.1} parent=5 // pred_fallthru
        _
    $region6: #{tpu_custom_call.1} parent=1 // loop_footer
      %s17 = sadd.s32 1, %s13
    $region7: #{tpu_custom_call.1} parent=1 // loop_footer_branch
      %12 = sbr.rel target = $region3
    $region8: #{tpu_custom_call.1} parent=1 // loop_exit
      _
    %437 = vsyncpa [#allocation3], 1
    %s438 = scalar_lea.sflag [#allocation3], 1
    %439 = vsyncpa %s438, 1

</llo_original>
